<compile_context>
chip_gen: v7x
topology: tpu7x:2x2x1
jax: 0.10.0
libtpu: 0.0.40
codegen_flags: <defaults>
</compile_context>

<pallas_src>
import jax
import jax.numpy as jnp
from jax.experimental import pallas as pl
from jax.experimental.pallas import tpu as pltpu


def _round_up(x, m):
    return ((x + m - 1) // m) * m


def _vmem_capacity_bytes():
    try:
        cap = getattr(pltpu.get_tpu_info(), "vmem_capacity_bytes", None)
        if cap:
            return int(cap)
    except Exception:
        pass
    return 64 * 1024 * 1024  # conservative (v7x-sized) fallback


_VMEM_CAP = _vmem_capacity_bytes()
_VMEM_BUDGET = int(_VMEM_CAP * 0.60)   # ~38 MiB on v7x, ~77 MiB on v5e/v6e
_VMEM_LIMIT = int(_VMEM_CAP * 0.75)    # ~48 MiB on v7x, ~96 MiB on v5e/v6e


def _net_kernel(x_ref, w_ref, b_ref, o_ref):
    # x_ref: (T, d)   batch tile of inputs (native dtype)
    # w_ref: (d, TK)  composed whitening+rotation weight column block (f32, resident)
    # b_ref: (1, TK)  composed bias block (resident)
    # o_ref: (T, TK)  output tile
    y = jnp.dot(x_ref[...].astype(jnp.float32), w_ref[...],
                preferred_element_type=jnp.float32)
    o_ref[...] = (y + b_ref[...]).astype(o_ref.dtype)


@jax.jit
def net_forward(x, mean, w_pca, var, w_ica):
    """Fused whitening + rotation forward pass on TPU via Pallas."""
    n, d = x.shape
    k = w_pca.shape[1]

    # --- wrapper-side algebra (tiny one-time XLA ops) ------------------------
    # TODO(synk): no epsilon added to var, matching the PyTorch module exactly.
    inv_std = 1.0 / jnp.sqrt(var.astype(jnp.float32))
    w_comb = (w_pca.astype(jnp.float32) * inv_std[None, :]) @ w_ica.astype(jnp.float32).T
    bias = -(mean.astype(jnp.float32) @ w_comb)           # (k,)
    b2 = bias.reshape(1, k)

    out_dtype = (x.dtype if x.dtype in (jnp.dtype(jnp.float32), jnp.dtype(jnp.bfloat16))
                 else jnp.float32)
    x_item = jnp.dtype(x.dtype).itemsize
    o_item = jnp.dtype(out_dtype).itemsize

    # --- k tile: weight column block that stays VMEM resident per k-block ----
    def resident_bytes(tk_):
        # Pallas double-buffers every input, including constant-index ones.
        return 2 * 4 * (d * tk_ + tk_)

    tk = k
    if k > 128 and resident_bytes(k) > _VMEM_BUDGET // 2:
        tk = 128
        while 2 * tk < k and resident_bytes(2 * tk) <= _VMEM_BUDGET // 2:
            tk *= 2
    # TODO(synk): for huge d (a single (d, 128) weight column exceeding the budget)
    # a d-reduction grid axis with an f32 VMEM accumulator would be needed.
    k_blocks = pl.cdiv(k, tk)

    # --- batch tile: grow to fill what is left of the VMEM budget ------------
    bytes_per_row = 2 * (x_item * d + o_item * tk)        # double-buffered X / Y tiles
    avail = max(_VMEM_BUDGET - resident_bytes(tk), 8 * bytes_per_row)
    t = avail // bytes_per_row
    if t >= n:
        t = n                         # single batch block (block dim == full array dim)
    elif t >= 256:
        t = (t // 256) * 256
    else:
        t = max(8, (t // 8) * 8)
    # v7x megacore: keep >= 2 parallel grid steps when there is enough work.
    if k_blocks == 1 and n >= 512:
        half = _round_up(-(-n // 2), 256)
        if t > half:
            t = half
    n_blocks = pl.cdiv(n, t)

    cost = pl.CostEstimate(
        flops=2 * n * d * k,
        transcendentals=0,
        bytes_accessed=x_item * n * d + 4 * (d * k + k) + o_item * n * k,
    )

    return pl.pallas_call(
        _net_kernel,
        out_shape=jax.ShapeDtypeStruct((n, k), out_dtype),
        grid_spec=pltpu.PrefetchScalarGridSpec(
            num_scalar_prefetch=0,
            grid=(n_blocks, k_blocks),
            in_specs=[
                pl.BlockSpec((t, d), lambda i, j: (i, 0)),    # X tile (streamed, unpadded)
                pl.BlockSpec((d, tk), lambda i, j: (0, j)),   # W_comb column (resident)
                pl.BlockSpec((1, tk), lambda i, j: (0, j)),   # bias block (resident)
            ],
            out_specs=pl.BlockSpec((t, tk), lambda i, j: (i, j)),
        ),
        compiler_params=pltpu.CompilerParams(
            dimension_semantics=("parallel", "parallel"),
            vmem_limit_bytes=_VMEM_LIMIT,
        ),
        cost_estimate=cost,
    )(x, w_comb, b2)


def net_forward_ref(x, mean, w_pca, var, w_ica):
    z = (x - mean[None, :]) @ w_pca / jnp.sqrt(var)[None, :]
    return z @ w_ica.T


if __name__ == "__main__":
    # Small shapes consistent with Net(n_input, n_components):
    batch, n_input, n_components = 16, 64, 32

    key = jax.random.PRNGKey(0)
    kx, km, kw, kv = jax.random.split(key, 4)

    x = jax.random.normal(kx, (batch, n_input), dtype=jnp.float32)

    # Deterministic synthetic parameters (module __init__ defines the shapes):
    mean = jax.random.normal(km, (n_input,), dtype=jnp.float32) * 0.1
    w_pca = jax.random.normal(kw, (n_input, n_components), dtype=jnp.float32) * 0.05
    var = jax.random.uniform(kv, (n_components,), dtype=jnp.float32,
                             minval=0.5, maxval=1.5)
    # init_eye=True -> SO_Layer weight initialized to identity.
    w_ica = jnp.eye(n_components, dtype=jnp.float32)

    y = net_forward(x, mean, w_pca, var, w_ica)
    y = jax.block_until_ready(y)

    y_ref = net_forward_ref(x, mean, w_pca, var, w_ica)
    assert y.shape == (batch, n_components)
    assert jnp.allclose(y, y_ref, atol=1e-5, rtol=1e-5), "mismatch vs reference"

    print("KERNEL_OK")
</pallas_src>

<mosaic_0001>
module attributes {stable_mosaic.version = 11 : i64} {
  func.func @_net_kernel(%arg0: i32, %arg1: i32, %arg2: memref<16x64xf32, #tpu.memory_space<vmem>>, %arg3: memref<64x32xf32, #tpu.memory_space<vmem>>, %arg4: memref<1x32xf32, #tpu.memory_space<vmem>>, %arg5: memref<16x32xf32, #tpu.memory_space<vmem>>) attributes {dimension_semantics = [#tpu.dimension_semantics<parallel>, #tpu.dimension_semantics<parallel>], iteration_bounds = array<i64: 1, 1>, scalar_prefetch = 0 : i64, scratch_operands = 0 : i64, tpu.core_type = #tpu.core_type<tc>, window_params = [{transform_indices = @transform_0, window_bounds = array<i64: 16, 64>}, {transform_indices = @transform_1, window_bounds = array<i64: 64, 32>}, {transform_indices = @transform_2, window_bounds = array<i64: 1, 32>}, {transform_indices = @transform_3, window_bounds = array<i64: 16, 32>}]} {
    %c0 = arith.constant 0 : index
    %c0_0 = arith.constant 0 : index
    %0 = vector.load %arg2[%c0, %c0_0] : memref<16x64xf32, #tpu.memory_space<vmem>>, vector<16x64xf32>
    %c0_1 = arith.constant 0 : index
    %c0_2 = arith.constant 0 : index
    %1 = vector.load %arg3[%c0_1, %c0_2] : memref<64x32xf32, #tpu.memory_space<vmem>>, vector<64x32xf32>
    %cst = arith.constant dense<0.000000e+00> : vector<16x32xf32>
    %2 = tpu.matmul %0, %1, %cst {dimension_numbers = #tpu.dot_dimension_numbers<[1], [0], [0], [1], [0, 0, 1, 1], [], []>} : vector<16x64xf32>, vector<64x32xf32>, vector<16x32xf32> -> vector<16x32xf32>
    %c0_3 = arith.constant 0 : index
    %c0_4 = arith.constant 0 : index
    %3 = vector.load %arg4[%c0_3, %c0_4] : memref<1x32xf32, #tpu.memory_space<vmem>>, vector<1x32xf32>
    %4 = vector.broadcast %3 : vector<1x32xf32> to vector<16x32xf32>
    %5 = arith.addf %2, %4 : vector<16x32xf32>
    %c0_5 = arith.constant 0 : index
    %c0_6 = arith.constant 0 : index
    %6 = vector.load %arg5[%c0_5, %c0_6] : memref<16x32xf32, #tpu.memory_space<vmem>>, vector<16x32xf32>
    tpu.vector_store %arg5[%c0_5, %c0_6], %5 {strides = array<i32>} : memref<16x32xf32, #tpu.memory_space<vmem>>, vector<16x32xf32>,
    return
  }
  func.func @transform_0(%arg0: i32, %arg1: i32) -> (i32, i32) {
    %c0_i32 = arith.constant 0 : i32
    %c0_i32_0 = arith.constant 0 : i32
    return %arg0, %c0_i32 : i32, i32
  }
  func.func @transform_1(%arg0: i32, %arg1: i32) -> (i32, i32) {
    %c0_i32 = arith.constant 0 : i32
    %c0_i32_0 = arith.constant 0 : i32
    return %c0_i32, %arg1 : i32, i32
  }
  func.func @transform_2(%arg0: i32, %arg1: i32) -> (i32, i32) {
    %c0_i32 = arith.constant 0 : i32
    %c0_i32_0 = arith.constant 0 : i32
    return %c0_i32, %arg1 : i32, i32
  }
  func.func @transform_3(%arg0: i32, %arg1: i32) -> (i32, i32) {
    %c0_i32 = arith.constant 0 : i32
    return %arg0, %arg1 : i32, i32
  }
}

</mosaic_0001>

<llo_original>
// kernel: net_forward.1
$region0: #{net_forward.1}
  #allocation0 [shape = 'u32[]', space=smem, size = 0x4, offset = 0x4, fixed_abs, tag = 'smem constant byte address 0x4 - core index']
  #allocation1 [shape = 'u32[144,128]{1,0:T(1,128)}', space=vmem, size = 0x12000, scoped, tag = 'internal scratch']
  %s0 = inlined_call_operand.vmem [shape: f32[16,64], index: 0, kind: input, shape index: {}]
  %s1 = inlined_call_operand.vmem [shape: f32[64,32], index: 1, kind: input, shape index: {}]
  %s2 = inlined_call_operand.vmem [shape: f32[1,32], index: 2, kind: input, shape index: {}]
  %s3 = inlined_call_operand.hbm [shape: f32[16,32], index: 3, kind: output, shape index: {}]
  %s4 = sld [smem:[#allocation0]]
  $region22: #{net_forward.1} parent=0
    _
  %s6 = ssub.s32 1, %s4
  %s7 = scalar_select 0, %s6, %s4
  $region1: #{net_forward.1} parent=0
    #allocation2 [shape = 'u8[8192]{0}', space=vmem, size = 0x2000, scoped, tag = 'output window, operand 0, single buffered']
    #allocation3 [shape = 's32[1]{0}', space=sflag, size = 0x4, scoped, tag = 'scoped memory for net_forward.1']
    %8 = vsyncpa [#allocation3], 0
    // Predicated region
    $region2: #{net_forward.1} parent=1 // pred_check
      _
    $region3: #{net_forward.1} parent=1 // pred_check_branch
      %10 = sbr.rel (0) target = $region5
    $region4: #{net_forward.1} parent=1 // pred_region
      _
    $region5: #{net_forward.1} parent=1 // pred_fallthru
      _
    // Predicated region
    $region6: #{net_forward.1} parent=1 // pred_check
      _
    $region7: #{net_forward.1} parent=1 // pred_check_branch
      %12 = sbr.rel (0) target = $region9
    $region8: #{net_forward.1} parent=1 // pred_region
      _
    $region9: #{net_forward.1} parent=1 // pred_fallthru
      _
    // Predicated region
    $region10: #{net_forward.1} parent=1 // pred_check
      _
    $region11: #{net_forward.1} parent=1 // pred_check_branch
      %14 = sbr.rel (0) target = $region13
    $region12: #{net_forward.1} parent=1 // pred_region
      _
    $region13: #{net_forward.1} parent=1 // pred_fallthru
      _
    %v15 = vld [vmem:[%s0] sm:$0xff]
    %v16 = vld [vmem:[%s0 + $0x8] sm:$0xff]
    %v17 = vld [vmem:[%s1] sm:$0xff]
    %v18 = vld [vmem:[%s1 + $0x8] sm:$0xff]
    %v19 = vld [vmem:[%s1 + $0x10] sm:$0xff]
    %v20 = vld [vmem:[%s1 + $0x18] sm:$0xff]
    %v21 = vld [vmem:[%s1 + $0x20] sm:$0xff]
    %v22 = vld [vmem:[%s1 + $0x28] sm:$0xff]
    %v23 = vld [vmem:[%s1 + $0x30] sm:$0xff]
    %v24 = vld [vmem:[%s1 + $0x38] sm:$0xff]
    %v25 = vld [vmem:[%s2] sm:$0x1]
    %v27 = vlaneseq
    %v28 = vshrl.u32 %v27, 7
    %v29 = vsub.s32 0, %v28
    %v30 = vrot.slane %v25, %v29
    %vm32 = vcmask 523264
    %v34 = vsel %vm32, %v15, 0
    %v37 = vsel %vm32, %v16, 0
    %39 = vmatprep.subr.mxu0 0.0
    %40 = vmatpush1.msra.mxu0 %v17
    %41 = vmatprep.subr.mxu0 0.0
    %42 = vmatpush1.msra.mxu0 %v18
    %43 = vmatprep.subr.mxu0 0.0
    %44 = vmatpush1.msra.mxu0 %v19
    %45 = vmatprep.subr.mxu0 0.0
    %46 = vmatpush1.msra.mxu0 %v20
    %47 = vmatprep.subr.mxu0 0.0
    %48 = vmatpush1.msra.mxu0 %v21
    %49 = vmatprep.subr.mxu0 0.0
    %50 = vmatpush1.msra.mxu0 %v22
    %51 = vmatprep.subr.mxu0 0.0
    %52 = vmatpush1.msra.mxu0 %v23
    %53 = vmatprep.subr.mxu0 0.0
    %54 = vmatpush1.msra.mxu0 %v24
    %55 = vmatprep.subr.mxu0 0.0
    %56 = vmatpush1.msra.mxu0 0.0
    %57 = vmatprep.subr.mxu0 0.0
    %58 = vmatpush1.msra.mxu0 0.0
    %59 = vmatprep.subr.mxu0 0.0
    %60 = vmatpush1.msra.mxu0 0.0
    %61 = vmatprep.subr.mxu0 0.0
    %62 = vmatpush1.msra.mxu0 0.0
    %63 = vmatprep.subr.mxu0 0.0
    %64 = vmatpush1.msra.mxu0 0.0
    %65 = vmatprep.subr.mxu0 0.0
    %66 = vmatpush1.msra.mxu0 0.0
    %67 = vmatprep.subr.mxu0 0.0
    %68 = vmatpush1.msra.mxu0 0.0
    %69 = vmatprep.subr.mxu0 0.0
    %70 = vmatpush1.msra.mxu0 0.0
    %71 = vmatprep.subr.mxu0 0.0
    %72 = vmatpush1.msra.mxu0 0.0
    %73 = vmatprep.subr.mxu0 0.0
    %74 = vmatpush1.msra.mxu0 0.0
    %75 = vmatprep.subr.mxu0 0.0
    %76 = vmatpush1.msra.mxu0 0.0
    %77 = vmatprep.subr.mxu0 0.0
    %78 = vmatpush1.msra.mxu0 0.0
    %79 = vmatprep.subr.mxu0 0.0
    %80 = vmatpush1.msra.mxu0 0.0
    %81 = vmatprep.subr.mxu0 0.0
    %82 = vmatpush1.msra.mxu0 0.0
    %83 = vmatprep.subr.mxu0 0.0
    %84 = vmatpush1.msra.mxu0 0.0
    %85 = vmatprep.subr.mxu0 0.0
    %86 = vmatpush1.msra.mxu0 0.0
    %87 = vmatprep.subr.mxu0 0.0
    %88 = vmatpush1.msra.mxu0 0.0
    %89 = vmatprep.subr.mxu0 0.0
    %90 = vmatpush1.msra.mxu0 0.0
    %91 = vmatprep.subr.mxu0 0.0
    %92 = vmatpush1.msra.mxu0 0.0
    %93 = vmatprep.subr.mxu0 0.0
    %94 = vmatpush1.msra.mxu0 0.0
    %95 = vmatprep.subr.mxu0 0.0
    %96 = vmatpush1.msra.mxu0 0.0
    %97 = vmatprep.subr.mxu0 0.0
    %98 = vmatpush1.msra.mxu0 0.0
    %99 = vmatprep.subr.mxu0 0.0
    %100 = vmatpush1.msra.mxu0 0.0
    %101 = vmatprep.subr.mxu0 0.0
    %102 = vmatpush1.msra.mxu0 0.0
    %103 = vmatprep.mubr.f32.mxu0 0.0
    %104 = vmatmul.mubr.f32.gmra.mrb[0].mxu0 %v34
    %v105 = vpop.f32.mrb[0].mxu0
    %v106 = vadd.f32 %v30, %v105
    %v107 = vpop.f32.mrb[0].mxu0
    %108 = vmatprep.mubr.f32.mxu0 0.0
    %109 = vmatmul.mubr.f32.gmra.mrb[0].mxu0 %v37
    %v110 = vpop.f32.mrb[0].mxu0
    %v111 = vadd.f32 %v30, %v110
    %v112 = vpop.f32.mrb[0].mxu0
    %113 = vdwg.mxu0
    %vm114 = vcmask 261120
    %115 = vst.msk [vmem:[#allocation2] sm:$0xff] %vm114, %v106
    %116 = vst.msk [vmem:[#allocation2 + $0x8] sm:$0xff] %vm114, %v111
    // Predicated region
    $region14: #{net_forward.1} parent=1 // pred_check
      _
    $region15: #{net_forward.1} parent=1 // pred_check_branch
      %118 = sbr.rel (0) target = $region17
    $region16: #{net_forward.1} parent=1 // pred_region
      %s120 = ssub.s32 256, 256
      %121 = vsyncadd [#allocation3], %s120
      %s122 = sshll.u32 [#allocation2], 4
      %s123 = int_to_ptr.vmem [resolvable:$true] %s122
      %128 = dma.vmem_to_hbm [thread:$0]  %s123, 256, %s3, [#allocation3], 128, 128, 8
    $region17: #{net_forward.1} parent=1 // pred_fallthru
      _
    // Predicated region
    $region18: #{net_forward.1} parent=1 // pred_check
      _
    $region19: #{net_forward.1} parent=1 // pred_check_branch
      %130 = sbr.rel (0) target = $region21
    $region20: #{net_forward.1} parent=1 // pred_region
      %131 = dma.done [#allocation3], 256
    $region21: #{net_forward.1} parent=1 // pred_fallthru
      _
    %132 = vsyncpa [#allocation3], 1

</llo_original>
